<compile_context>
chip_gen: v7x
topology: tpu7x:2x2x1
jax: 0.10.0
libtpu: 0.0.40
codegen_flags: <defaults>
</compile_context>

<pallas_src>
import jax
import jax.numpy as jnp
from jax import lax
from jax.experimental import pallas as pl
from jax.experimental.pallas import tpu as pltpu


def _make_kernel(S, N_pad, tS, num_blocks):
    def kernel(x_ref, xh_ref, wt_ref, b_ref, out_ref):
        i = pl.program_id(0)

        x = x_ref[...]                        # (tS, Np)  native dtype (no VPU upcast)
        wt = wt_ref[...]                      # (Np, Np)  W.T, transposed once in wrapper
        b = b_ref[...].astype(jnp.float32)    # (1, Np)   tiny, f32 for the add with y

        # y = x @ W.T + b on the MXU, f32 accumulation, native-dtype operands.
        y = jnp.dot(x, wt, preferred_element_type=jnp.float32) + b     # (tS, Np) f32

        # Within-block pairs y[j] vs x[j+1]: whole-vreg sublane roll (XLU slot)
        # instead of unaligned [1:] / [:-1] slices.
        x_next = pltpu.roll(x, shift=tS - 1, axis=0).astype(jnp.float32)
        d = y - x_next
        sq = d * d

        # Row mask.  Every block excludes its wrap row (tS-1); only the last
        # (possibly ragged/padded) block needs a tighter limit, folded into one
        # scalar select.  Select-masking (not multiply) so garbage in padded
        # rows of the last block can never propagate.
        last_valid = S - 1 - (num_blocks - 1) * tS            # python int >= 0
        limit = jnp.where(i == num_blocks - 1,
                          jnp.int32(last_valid), jnp.int32(tS - 1))
        local = lax.broadcasted_iota(jnp.int32, (tS, 1), 0)
        sqm = jnp.where(local < limit, sq, jnp.float32(0.0))          # (tS, Np)

        # Cross-block boundary pair: y[i*tS - 1] vs x[i*tS].  The previous row's
        # y is recomputed from the 8-row halo (no serial carry -> "parallel" S axis).
        yh = jnp.dot(xh_ref[...], wt, preferred_element_type=jnp.float32) + b  # (8, Np)
        dc = yh[7:8, :] - x[0:1, :].astype(jnp.float32)                          # (1, Np)

        # Per-block partial sums kept in (8, Np) vreg shape: only VPU adds here;
        # the single cross-lane reduction happens once in the wrapper.
        part = jnp.zeros((8, N_pad), dtype=jnp.float32)
        for k in range(tS // 8):                      # static, 8-row-aligned slices
            part = part + sqm[k * 8:(k + 1) * 8, :]

        row0 = lax.broadcasted_iota(jnp.int32, (8, 1), 0) == 0
        part = part + jnp.where(row0 & (i > 0), dc * dc, jnp.float32(0.0))

        out_ref[...] = part

    return kernel


def linear_base_3_forward(x, w, b, block_rows=None):
    """x: (S, N); w: (N, N) PyTorch (out, in) layout; b: (N,).

    Returns (loss, l1) exactly like the PyTorch module; l1 is None.
    """
    S, N = x.shape

    # Lane-dense model dim: zero-pad N to a multiple of 128 only when needed.
    # Zero-padded columns of x / W.T / b produce exactly-zero diffs, so no
    # column mask is required; the mean still divides by the original N.
    N_pad = ((N + 127) // 128) * 128
    if N_pad != N:
        x_p = jnp.pad(x, ((0, 0), (0, N_pad - N)))
        w_t = jnp.pad(w.T, ((0, N_pad - N), (0, N_pad - N)))
        b_p = jnp.pad(b, (0, N_pad - N))
    else:
        x_p, w_t, b_p = x, w.T, b
    b2d = b_p.reshape(1, N_pad)

    if block_rows is None:
        block_rows = min(1024, S)                     # bigger default x tile
    tS = max(8, ((min(block_rows, S) + 7) // 8) * 8)  # sublane-aligned row tile
    num_blocks = pl.cdiv(S, tS)
    halo_blocks = tS // 8

    # Explicit scoped-VMEM budget: W.T (worst-case double-buffered) + streamed
    # x tiles + halo + bias + partial outputs + f32 intermediates, with headroom.
    needed = (2 * N_pad * N_pad * w_t.dtype.itemsize
              + 2 * tS * N_pad * x_p.dtype.itemsize
              + 2 * 8 * N_pad * x_p.dtype.itemsize
              + 2 * N_pad * b2d.dtype.itemsize
              + 2 * 8 * N_pad * 4
              + 4 * tS * N_pad * 4)
    vmem_limit = int(min(max(needed + (16 << 20), 32 << 20), 100 << 20))

    kernel = _make_kernel(S, N_pad, tS, num_blocks)

    partials = pl.pallas_call(
        kernel,
        out_shape=jax.ShapeDtypeStruct((num_blocks * 8, N_pad), jnp.float32),
        grid=(num_blocks,),
        in_specs=[
            pl.BlockSpec((tS, N_pad), lambda i: (i, 0)),                # x stream
            pl.BlockSpec((8, N_pad),                                     # 8-row halo
                         lambda i: (jnp.maximum(i * halo_blocks - 1, 0), 0)),
            pl.BlockSpec((N_pad, N_pad), lambda i: (0, 0)),              # W.T resident
            pl.BlockSpec((1, N_pad), lambda i: (0, 0)),                  # bias resident
        ],
        out_specs=pl.BlockSpec((8, N_pad), lambda i: (i, 0)),            # per-block partials
        compiler_params=pltpu.CompilerParams(
            dimension_semantics=("parallel",),        # no cross-block state
            vmem_limit_bytes=vmem_limit),
    )(x_p, x_p, w_t, b2d)

    # One final cross-lane reduction over (num_blocks*8, N_pad) tiny partials.
    # Note: S <= 1 divides by zero (NaN), matching torch mse_loss on empty input.
    loss = jnp.sum(partials) / jnp.float32((S - 1) * N)
    return loss, None


def _reference(x, w, b):
    y = x @ w.T + b
    d = y[:-1] - x[1:]
    return jnp.mean(d * d)


if __name__ == "__main__":
    key = jax.random.PRNGKey(0)
    kx, kw, kb = jax.random.split(key, 3)

    # Small shapes consistent with forward(): Input is (seq_len, N).
    S, N = 16, 32
    x = jax.random.normal(kx, (S, N), dtype=jnp.float32)
    bound = 1.0 / jnp.sqrt(jnp.float32(N))
    w = jax.random.uniform(kw, (N, N), dtype=jnp.float32, minval=-bound, maxval=bound)
    b = jax.random.uniform(kb, (N,), dtype=jnp.float32, minval=-bound, maxval=bound)

    # Multi-block path (tS=8 -> 2 grid steps): exercises the halo boundary term.
    loss, l1 = linear_base_3_forward(x, w, b, block_rows=8)
    loss = jax.block_until_ready(loss)
    ref = _reference(x, w, b)
    assert l1 is None
    assert jnp.allclose(loss, ref, rtol=1e-5, atol=1e-5), (loss, ref)

    # Ragged seq_len (not a multiple of the row tile) + multi-block: pad mask + halo.
    S2 = 13
    x2 = jax.random.normal(kx, (S2, N), dtype=jnp.float32)
    loss2, _ = linear_base_3_forward(x2, w, b, block_rows=8)
    loss2 = jax.block_until_ready(loss2)
    ref2 = _reference(x2, w, b)
    assert jnp.allclose(loss2, ref2, rtol=1e-5, atol=1e-5), (loss2, ref2)

    # Lane-aligned N (no-pad path), 3 blocks.
    S3, N3 = 24, 128
    kx3, kw3, kb3 = jax.random.split(jax.random.PRNGKey(0), 3)
    x3 = jax.random.normal(kx3, (S3, N3), dtype=jnp.float32)
    bound3 = 1.0 / jnp.sqrt(jnp.float32(N3))
    w3 = jax.random.uniform(kw3, (N3, N3), dtype=jnp.float32, minval=-bound3, maxval=bound3)
    b3 = jax.random.uniform(kb3, (N3,), dtype=jnp.float32, minval=-bound3, maxval=bound3)
    loss3, _ = linear_base_3_forward(x3, w3, b3, block_rows=8)
    loss3 = jax.block_until_ready(loss3)
    ref3 = _reference(x3, w3, b3)
    assert jnp.allclose(loss3, ref3, rtol=1e-5, atol=1e-5), (loss3, ref3)

    print("KERNEL_OK")
</pallas_src>

<mosaic_0001>
module attributes {stable_mosaic.version = 11 : i64} {
  func.func @kernel(%arg0: i32, %arg1: memref<8x128xf32, #tpu.memory_space<vmem>>, %arg2: memref<8x128xf32, #tpu.memory_space<vmem>>, %arg3: memref<128x128xf32, #tpu.memory_space<vmem>>, %arg4: memref<1x128xf32, #tpu.memory_space<vmem>>, %arg5: memref<8x128xf32, #tpu.memory_space<vmem>>) attributes {dimension_semantics = [#tpu.dimension_semantics<parallel>], iteration_bounds = array<i64: 2>, scalar_prefetch = 0 : i64, scratch_operands = 0 : i64, tpu.core_type = #tpu.core_type<tc>, window_params = [{transform_indices = @transform_0, window_bounds = array<i64: 8, 128>}, {transform_indices = @transform_1, window_bounds = array<i64: 8, 128>}, {pipeline_mode = #tpu.pipeline_mode<synchronous>, transform_indices = @transform_2, window_bounds = array<i64: 128, 128>}, {pipeline_mode = #tpu.pipeline_mode<synchronous>, transform_indices = @transform_3, window_bounds = array<i64: 1, 128>}, {transform_indices = @transform_4, window_bounds = array<i64: 8, 128>}]} {
    %c0 = arith.constant 0 : index
    %c0_0 = arith.constant 0 : index
    %0 = vector.load %arg1[%c0, %c0_0] : memref<8x128xf32, #tpu.memory_space<vmem>>, vector<8x128xf32>
    %c0_1 = arith.constant 0 : index
    %c0_2 = arith.constant 0 : index
    %1 = vector.load %arg3[%c0_1, %c0_2] : memref<128x128xf32, #tpu.memory_space<vmem>>, vector<128x128xf32>
    %c0_3 = arith.constant 0 : index
    %c0_4 = arith.constant 0 : index
    %2 = vector.load %arg4[%c0_3, %c0_4] : memref<1x128xf32, #tpu.memory_space<vmem>>, vector<1x128xf32>
    %cst = arith.constant dense<0.000000e+00> : vector<8x128xf32>
    %3 = tpu.matmul %0, %1, %cst {dimension_numbers = #tpu.dot_dimension_numbers<[1], [0], [0], [1], [0, 0, 1, 1], [], []>} : vector<8x128xf32>, vector<128x128xf32>, vector<8x128xf32> -> vector<8x128xf32>
    %4 = vector.broadcast %2 : vector<1x128xf32> to vector<8x128xf32>
    %5 = arith.addf %3, %4 : vector<8x128xf32>
    %c7_i32 = arith.constant 7 : i32
    %6 = tpu.dynamic_rotate %0 by %c7_i32 dim 0 : vector<8x128xf32>, i32 -> vector<8x128xf32>
    %7 = arith.subf %5, %6 : vector<8x128xf32>
    %8 = arith.mulf %7, %7 : vector<8x128xf32>
    %c1_i32 = arith.constant 1 : i32
    %9 = arith.cmpi eq, %arg0, %c1_i32 : i32
    %c7_i32_5 = arith.constant 7 : i32
    %c7_i32_6 = arith.constant 7 : i32
    %10 = arith.select %9, %c7_i32_5, %c7_i32_6 : i32
    %11 = tpu.iota {dimensions = array<i32: 0>} : vector<8x1xi32>
    %12 = vector.broadcast %10 : i32 to vector<8x1xi32>
    %13 = arith.cmpi slt, %11, %12 : vector<8x1xi32>
    %cst_7 = arith.constant 0.000000e+00 : f32
    %14 = vector.shape_cast %13 : vector<8x1xi1> to vector<8x1xi1>
    %15 = vector.broadcast %14 : vector<8x1xi1> to vector<8x128xi1>
    %16 = vector.broadcast %cst_7 : f32 to vector<8x128xf32>
    %17 = arith.select %15, %8, %16 : vector<8x128xi1>, vector<8x128xf32>
    %c0_8 = arith.constant 0 : index
    %c0_9 = arith.constant 0 : index
    %18 = vector.load %arg2[%c0_8, %c0_9] : memref<8x128xf32, #tpu.memory_space<vmem>>, vector<8x128xf32>
    %cst_10 = arith.constant dense<0.000000e+00> : vector<8x128xf32>
    %19 = tpu.matmul %18, %1, %cst_10 {dimension_numbers = #tpu.dot_dimension_numbers<[1], [0], [0], [1], [0, 0, 1, 1], [], []>} : vector<8x128xf32>, vector<128x128xf32>, vector<8x128xf32> -> vector<8x128xf32>
    %20 = vector.broadcast %2 : vector<1x128xf32> to vector<8x128xf32>
    %21 = arith.addf %19, %20 : vector<8x128xf32>
    %22 = vector.extract_strided_slice %21 {offsets = [7, 0], sizes = [1, 128], strides = [1, 1]} : vector<8x128xf32> to vector<1x128xf32>
    %23 = vector.extract_strided_slice %0 {offsets = [0, 0], sizes = [1, 128], strides = [1, 1]} : vector<8x128xf32> to vector<1x128xf32>
    %24 = arith.subf %22, %23 : vector<1x128xf32>
    %cst_11 = arith.constant 0.000000e+00 : f32
    %25 = vector.broadcast %cst_11 : f32 to vector<8x128xf32>
    %26 = arith.addf %25, %17 : vector<8x128xf32>
    %27 = tpu.iota {dimensions = array<i32: 0>} : vector<8x1xi32>
    %c0_i32 = arith.constant 0 : i32
    %28 = vector.broadcast %c0_i32 : i32 to vector<8x1xi32>
    %29 = arith.cmpi eq, %27, %28 : vector<8x1xi32>
    %c0_i32_12 = arith.constant 0 : i32
    %30 = arith.cmpi sgt, %arg0, %c0_i32_12 : i32
    %31 = vector.broadcast %30 : i1 to vector<8x1xi1>
    %32 = arith.andi %29, %31 : vector<8x1xi1>
    %33 = arith.mulf %24, %24 : vector<1x128xf32>
    %cst_13 = arith.constant 0.000000e+00 : f32
    %34 = vector.shape_cast %32 : vector<8x1xi1> to vector<8x1xi1>
    %35 = vector.broadcast %34 : vector<8x1xi1> to vector<8x128xi1>
    %36 = vector.shape_cast %33 : vector<1x128xf32> to vector<1x128xf32>
    %37 = vector.broadcast %36 : vector<1x128xf32> to vector<8x128xf32>
    %38 = vector.broadcast %cst_13 : f32 to vector<8x128xf32>
    %39 = arith.select %35, %37, %38 : vector<8x128xi1>, vector<8x128xf32>
    %40 = arith.addf %26, %39 : vector<8x128xf32>
    %c0_14 = arith.constant 0 : index
    %c0_15 = arith.constant 0 : index
    %41 = vector.load %arg5[%c0_14, %c0_15] : memref<8x128xf32, #tpu.memory_space<vmem>>, vector<8x128xf32>
    tpu.vector_store %arg5[%c0_14, %c0_15], %40 {strides = array<i32>} : memref<8x128xf32, #tpu.memory_space<vmem>>, vector<8x128xf32>,
    return
  }
  func.func @transform_0(%arg0: i32) -> (i32, i32) {
    %c0_i32 = arith.constant 0 : i32
    %c0_i32_0 = arith.constant 0 : i32
    return %arg0, %c0_i32 : i32, i32
  }
  func.func @transform_1(%arg0: i32) -> (i32, i32) {
    %c1_i32 = arith.constant 1 : i32
    %0 = arith.muli %arg0, %c1_i32 : i32
    %c1_i32_0 = arith.constant 1 : i32
    %1 = arith.subi %0, %c1_i32_0 : i32
    %c0_i32 = arith.constant 0 : i32
    %2 = arith.maxsi %1, %c0_i32 : i32
    %c0_i32_1 = arith.constant 0 : i32
    %c0_i32_2 = arith.constant 0 : i32
    return %2, %c0_i32_1 : i32, i32
  }
  func.func @transform_2(%arg0: i32) -> (i32, i32) {
    %c0_i32 = arith.constant 0 : i32
    %c0_i32_0 = arith.constant 0 : i32
    %c0_i32_1 = arith.constant 0 : i32
    return %c0_i32, %c0_i32_0 : i32, i32
  }
  func.func @transform_3(%arg0: i32) -> (i32, i32) {
    %c0_i32 = arith.constant 0 : i32
    %c0_i32_0 = arith.constant 0 : i32
    %c0_i32_1 = arith.constant 0 : i32
    return %c0_i32, %c0_i32_0 : i32, i32
  }
  func.func @transform_4(%arg0: i32) -> (i32, i32) {
    %c0_i32 = arith.constant 0 : i32
    %c0_i32_0 = arith.constant 0 : i32
    return %arg0, %c0_i32 : i32, i32
  }
}

</mosaic_0001>

<llo_original>
// kernel: tpu_custom_call.1
$region0: #{tpu_custom_call.1}
  #allocation0 [shape = 'u32[]', space=smem, size = 0x4, offset = 0x4, fixed_abs, tag = 'smem constant byte address 0x4 - core index']
  #allocation1 [shape = 'u32[144,128]{1,0:T(1,128)}', space=vmem, size = 0x12000, scoped, tag = 'internal scratch']
  %s0 = inlined_call_operand.hbm [shape: f32[16,128], index: 0, kind: input, shape index: {}]
  %s1 = inlined_call_operand.hbm [shape: f32[16,128], index: 1, kind: input, shape index: {}]
  %s2 = inlined_call_operand.hbm [shape: f32[128,128], index: 2, kind: input, shape index: {}]
  %s3 = inlined_call_operand.vmem [shape: f32[1,128], index: 3, kind: input, shape index: {}]
  %s4 = inlined_call_operand.hbm [shape: f32[16,128], index: 4, kind: output, shape index: {}]
  %s5 = sld [smem:[#allocation0]]
  $region61: #{tpu_custom_call.1} parent=0
    _
  %s7 = ssub.s32 1, %s5
  %s8 = scalar_select 0, %s7, %s5
  $region1: #{tpu_custom_call.1} parent=0
    #allocation2 [shape = 'u8[8192]{0}', space=vmem, size = 0x2000, scoped, tag = 'input window, operand 0']
    #allocation3 [shape = 's32[2]{0}', space=sflag, size = 0x8, scoped, tag = 'scoped memory for tpu_custom_call.1']
    #allocation4 [shape = 's32[2]{0}', space=sflag, size = 0x8, scoped, tag = 'scoped memory for tpu_custom_call.1']
    #allocation5 [shape = 'u8[8192]{0}', space=vmem, size = 0x2000, scoped, tag = 'input window, operand 1']
    #allocation6 [shape = 's32[2]{0}', space=sflag, size = 0x8, scoped, tag = 'scoped memory for tpu_custom_call.1']
    #allocation7 [shape = 'u8[65536]{0}', space=vmem, size = 0x10000, scoped, tag = 'input window, operand 2, single buffered']
    #allocation8 [shape = 'u8[8192]{0}', space=vmem, size = 0x2000, scoped, tag = 'output window, operand 0']
    %9 = vsyncpa [#allocation3], 0
    %s10 = scalar_lea.sflag [#allocation3], 1
    %11 = vsyncpa %s10, 0
    %12 = vsyncpa [#allocation6], 0
    %s13 = scalar_lea.sflag [#allocation6], 1
    %14 = vsyncpa %s13, 0
    %15 = vsyncpa [#allocation4], 0
    %s16 = scalar_lea.sflag [#allocation4], 1
    %17 = vsyncpa %s16, 0
    loop: start=0, step=1, limit=4
    $region2: #{tpu_custom_call.1} parent=1 // loop_pre_header
      _
    $region3: #{tpu_custom_call.1} parent=1 // loop_header
      %s19 = sphi 0, %s23
      %p20 = scmp.ge.s32.totalorder %s19, 4
      %s29 = sphi 0, %s31
      %s32 = sphi 0, %s29
      %s33 = sphi 0, %s32
      %s49 = sphi 0, %s33
      %s61 = sphi 0, %s63
      %s64 = sphi 0, %s61
      %s65 = sphi 0, %s64
      %s81 = sphi 0, %s65
      %s85 = sphi 0, %s85
      %s87 = sphi 0, %s85
      %s88 = sphi 0, %s87
      %s102 = sphi 0, %s88
      %s106 = sphi 0, %s106
      %s108 = sphi 0, %s106
      %s109 = sphi 0, %s108
      %s123 = sphi 0, %s109
      %s129 = sphi 0, %s131
      %s132 = sphi 0, %s129
      %s133 = sphi 0, %s132
      %s149 = sphi 0, %s133
    $region4: #{tpu_custom_call.1} parent=1 // loop_header_branch
      %22 = sbr.rel (%p20) target = $region8
    $region5: #{tpu_custom_call.1} parent=1 // loop_body
      %s24 = ssub.s32 %s19, 1
      %s25 = ssub.s32 %s19, 2
      %s26 = sadd.s32 %s19, 1
      %s27 = ssub.s32 %s19, %s26
      %p28 = scmp.eq.s32.totalorder %s27, 0
      %s30 = sadd.s32 %s29, 1
      %s31 = scalar_select %p28, %s29, %s30
      %p34 = pneg %p28
      %p35 = scmp.eq.s32.totalorder %s19, 1
      %p36 = por %p34, %p35
      %p37 = scmp.ne.s32.totalorder %s29, %s32
      %p38 = scmp.eq.s32.totalorder %s19, 0
      %p39 = por %p37, %p38
      %p40 = scmp.ne.s32.totalorder %s29, %s32
      %p41 = scmp.eq.s32.totalorder %s24, 1
      %p42 = por %p40, %p41
      %p43 = scmp.ne.s32.totalorder %s32, %s33
      %p44 = scmp.eq.s32.totalorder %s24, 0
      %p45 = por %p43, %p44
      %p46 = scmp.ne.s32.totalorder %s32, %s33
      %p47 = scmp.eq.s32.totalorder %s25, 1
      %p48 = por %p46, %p47
      %p50 = scmp.ne.s32.totalorder %s33, %s49
      %p51 = scmp.eq.s32.totalorder %s25, 0
      %p52 = por %p50, %p51
      %s53 = ssub.s32 %s19, 1
      %p54 = scmp.gt.s32.totalorder %s53, 0
      %s55 = scalar_select %p54, %s53, 0
      %s56 = ssub.s32 %s26, 1
      %p57 = scmp.gt.s32.totalorder %s56, 0
      %s58 = scalar_select %p57, %s56, 0
      %s59 = ssub.s32 %s55, %s58
      %p60 = scmp.eq.s32.totalorder %s59, 0
      %s62 = sadd.s32 %s61, 1
      %s63 = scalar_select %p60, %s61, %s62
      %p66 = pneg %p60
      %p67 = scmp.eq.s32.totalorder %s19, 1
      %p68 = por %p66, %p67
      %p69 = scmp.ne.s32.totalorder %s61, %s64
      %p70 = scmp.eq.s32.totalorder %s19, 0
      %p71 = por %p69, %p70
      %p72 = scmp.ne.s32.totalorder %s61, %s64
      %p73 = scmp.eq.s32.totalorder %s24, 1
      %p74 = por %p72, %p73
      %p75 = scmp.ne.s32.totalorder %s64, %s65
      %p76 = scmp.eq.s32.totalorder %s24, 0
      %p77 = por %p75, %p76
      %p78 = scmp.ne.s32.totalorder %s64, %s65
      %p79 = scmp.eq.s32.totalorder %s25, 1
      %p80 = por %p78, %p79
      %p82 = scmp.ne.s32.totalorder %s65, %s81
      %p83 = scmp.eq.s32.totalorder %s25, 0
      %p84 = por %p82, %p83
      %s86 = sadd.s32 %s85, 1
      %p89 = scmp.eq.s32.totalorder %s19, 1
      %p90 = scmp.ne.s32.totalorder %s85, %s87
      %p91 = scmp.eq.s32.totalorder %s19, 0
      %p92 = por %p90, %p91
      %p93 = scmp.ne.s32.totalorder %s85, %s87
      %p94 = scmp.eq.s32.totalorder %s24, 1
      %p95 = por %p93, %p94
      %p96 = scmp.ne.s32.totalorder %s87, %s88
      %p97 = scmp.eq.s32.totalorder %s24, 0
      %p98 = por %p96, %p97
      %p99 = scmp.ne.s32.totalorder %s87, %s88
      %p100 = scmp.eq.s32.totalorder %s25, 1
      %p101 = por %p99, %p100
      %p103 = scmp.ne.s32.totalorder %s88, %s102
      %p104 = scmp.eq.s32.totalorder %s25, 0
      %p105 = por %p103, %p104
      %s107 = sadd.s32 %s106, 1
      %p110 = scmp.eq.s32.totalorder %s19, 1
      %p111 = scmp.ne.s32.totalorder %s106, %s108
      %p112 = scmp.eq.s32.totalorder %s19, 0
      %p113 = por %p111, %p112
      %p114 = scmp.ne.s32.totalorder %s106, %s108
      %p115 = scmp.eq.s32.totalorder %s24, 1
      %p116 = por %p114, %p115
      %p117 = scmp.ne.s32.totalorder %s108, %s109
      %p118 = scmp.eq.s32.totalorder %s24, 0
      %p119 = por %p117, %p118
      %p120 = scmp.ne.s32.totalorder %s108, %s109
      %p121 = scmp.eq.s32.totalorder %s25, 1
      %p122 = por %p120, %p121
      %p124 = scmp.ne.s32.totalorder %s109, %s123
      %p125 = scmp.eq.s32.totalorder %s25, 0
      %p126 = por %p124, %p125
      %s127 = ssub.s32 %s19, %s26
      %p128 = scmp.eq.s32.totalorder %s127, 0
      %s130 = sadd.s32 %s129, 1
      %s131 = scalar_select %p128, %s129, %s130
      %p134 = pneg %p128
      %p135 = scmp.eq.s32.totalorder %s19, 1
      %p136 = por %p134, %p135
      %p137 = scmp.ne.s32.totalorder %s129, %s132
      %p138 = scmp.eq.s32.totalorder %s19, 0
      %p139 = por %p137, %p138
      %p140 = scmp.ne.s32.totalorder %s129, %s132
      %p141 = scmp.eq.s32.totalorder %s24, 1
      %p142 = por %p140, %p141
      %p143 = scmp.ne.s32.totalorder %s132, %s133
      %p144 = scmp.eq.s32.totalorder %s24, 0
      %p145 = por %p143, %p144
      %p146 = scmp.ne.s32.totalorder %s132, %s133
      %p147 = scmp.eq.s32.totalorder %s25, 1
      %p148 = por %p146, %p147
      %p150 = scmp.ne.s32.totalorder %s133, %s149
      %p151 = scmp.eq.s32.totalorder %s25, 0
      %p152 = por %p150, %p151
      %p153 = scmp.le.s32.totalorder 1, %s19
      %p154 = scmp.lt.s32.totalorder %s19, 3
      %p155 = pnand %p153, %p154
      %p156 = pneg %p155
      // Predicated region
      $region9: #{tpu_custom_call.1} parent=5 // pred_check
        _
      $region10: #{tpu_custom_call.1} parent=5 // pred_check_branch
        %158 = sbr.rel (%p155) target = $region12
      $region11: #{tpu_custom_call.1} parent=5 // pred_region
        %s159 = ssub.s32 %s19, 1
        // Predicated region
        $region13: #{tpu_custom_call.1} parent=11 // pred_check
          %p160 = pneg %p98
        $region14: #{tpu_custom_call.1} parent=11 // pred_check_branch
          %162 = sbr.rel (%p160) target = $region16
        $region15: #{tpu_custom_call.1} parent=11 // pred_region
          %s164 = ssub.s32 2048, 2048
          %165 = vsyncadd [#allocation6], %s164
          %s166 = sshll.u32 [#allocation7], 4
          %s167 = int_to_ptr.vmem [resolvable:$true] %s166
          %172 = dma.hbm_to_vmem [thread:$0]  %s2, 2048, %s167, [#allocation6], 128, 128, 8
        $region16: #{tpu_custom_call.1} parent=11 // pred_fallthru
          _
        // Predicated region
        $region17: #{tpu_custom_call.1} parent=11 // pred_check
          %p173 = pneg %p119
        $region18: #{tpu_custom_call.1} parent=11 // pred_check_branch
          %175 = sbr.rel (%p173) target = $region20
        $region19: #{tpu_custom_call.1} parent=11 // pred_region
          _
        $region20: #{tpu_custom_call.1} parent=11 // pred_fallthru
          _
      $region12: #{tpu_custom_call.1} parent=5 // pred_fallthru
        _
      %p176 = scmp.lt.s32.totalorder %s19, 2
      // Predicated region
      $region21: #{tpu_custom_call.1} parent=5 // pred_check
        %p177 = pneg %p176
      $region22: #{tpu_custom_call.1} parent=5 // pred_check_branch
        %179 = sbr.rel (%p177) target = $region24
      $region23: #{tpu_custom_call.1} parent=5 // pred_region
        // Predicated region
        $region25: #{tpu_custom_call.1} parent=23 // pred_check
          %p180 = pneg %p39
        $region26: #{tpu_custom_call.1} parent=23 // pred_check_branch
          %182 = sbr.rel (%p180) target = $region28
        $region27: #{tpu_custom_call.1} parent=23 // pred_region
          %s183 = sand.u32 %s29, 1
          %s184 = scalar_lea.sflag [#allocation3], %s183
          %s185 = sand.u32 %s29, 1
          %s186 = smul.addr %s185, 8
          %s187 = scalar_lea.vmem [#allocation2], %s186
          %s189 = ssub.s32 128, 128
          %190 = vsyncadd %s184, %s189
          %s191 = smul.addr %s19, 128
          %s192 = scalar_lea.hbm %s0, %s191
          %s194 = sshll.u32 %s187, 4
          %s195 = int_to_ptr.vmem [resolvable:$true] %s194
          %197 = dma.hbm_to_vmem [thread:$0]  %s192, 128, %s195, %s184
        $region28: #{tpu_custom_call.1} parent=23 // pred_fallthru
          _
        // Predicated region
        $region29: #{tpu_custom_call.1} parent=23 // pred_check
          %p198 = pneg %p71
        $region30: #{tpu_custom_call.1} parent=23 // pred_check_branch
          %200 = sbr.rel (%p198) target = $region32
        $region31: #{tpu_custom_call.1} parent=23 // pred_region
          %s201 = sand.u32 %s19, 1
          %s202 = scalar_lea.sflag [#allocation6], %s201
          %s203 = sand.u32 %s61, 1
          %s204 = smul.addr %s203, 8
          %s205 = scalar_lea.vmem [#allocation5], %s204
          %s206 = ssub.s32 %s19, 1
          %p207 = scmp.gt.s32.totalorder %s206, 0
          %s208 = scalar_select %p207, %s206, 0
          %s210 = ssub.s32 128, 128
          %211 = vsyncadd %s202, %s210
          %s212 = smul.addr %s208, 128
          %s213 = scalar_lea.hbm %s1, %s212
          %s215 = sshll.u32 %s205, 4
          %s216 = int_to_ptr.vmem [resolvable:$true] %s215
          %218 = dma.hbm_to_vmem [thread:$0]  %s213, 128, %s216, %s202
        $region32: #{tpu_custom_call.1} parent=23 // pred_fallthru
          _
      $region24: #{tpu_custom_call.1} parent=5 // pred_fallthru
        _
      %p219 = scmp.le.s32.totalorder 1, %s19
      %p220 = scmp.lt.s32.totalorder %s19, 3
      %p221 = pnand %p219, %p220
      %p222 = pneg %p221
      // Predicated region
      $region33: #{tpu_custom_call.1} parent=5 // pred_check
        _
      $region34: #{tpu_custom_call.1} parent=5 // pred_check_branch
        %224 = sbr.rel (%p221) target = $region36
      $region35: #{tpu_custom_call.1} parent=5 // pred_region
        %s225 = ssub.s32 %s19, 1
        %s226 = sand.u32 %s32, 1
        %s227 = scalar_lea.sflag [#allocation3], %s226
        %s228 = sand.u32 %s32, 1
        %s229 = smul.addr %s228, 8
        %s230 = scalar_lea.vmem [#allocation2], %s229
        // Predicated region
        $region37: #{tpu_custom_call.1} parent=35 // pred_check
          %p231 = pneg %p45
        $region38: #{tpu_custom_call.1} parent=35 // pred_check_branch
          %233 = sbr.rel (%p231) target = $region40
        $region39: #{tpu_custom_call.1} parent=35 // pred_region
          %234 = dma.done %s227, 128
        $region40: #{tpu_custom_call.1} parent=35 // pred_fallthru
          _
        %s235 = sand.u32 %s24, 1
        %s236 = scalar_lea.sflag [#allocation6], %s235
        %s237 = sand.u32 %s64, 1
        %s238 = smul.addr %s237, 8
        %s239 = scalar_lea.vmem [#allocation5], %s238
        // Predicated region
        $region41: #{tpu_custom_call.1} parent=35 // pred_check
          %p240 = pneg %p77
        $region42: #{tpu_custom_call.1} parent=35 // pred_check_branch
          %242 = sbr.rel (%p240) target = $region44
        $region43: #{tpu_custom_call.1} parent=35 // pred_region
          %243 = dma.done %s236, 128
        $region44: #{tpu_custom_call.1} parent=35 // pred_fallthru
          _
        // Predicated region
        $region45: #{tpu_custom_call.1} parent=35 // pred_check
          %p244 = pneg %p98
        $region46: #{tpu_custom_call.1} parent=35 // pred_check_branch
          %246 = sbr.rel (%p244) target = $region48
        $region47: #{tpu_custom_call.1} parent=35 // pred_region
          %247 = dma.done [#allocation6], 2048
        $region48: #{tpu_custom_call.1} parent=35 // pred_fallthru
          _
        %s248 = sand.u32 %s32, 1
        %s249 = scalar_lea.sflag [#allocation3], %s248
        %s250 = sand.u32 %s32, 1
        %s251 = smul.addr %s250, 8
        %s252 = scalar_lea.vmem [#allocation2], %s251
        %p253 = pneg %p45
        %p254 = pneg %p42
        %s255 = sand.u32 %s24, 1
        %s256 = scalar_lea.sflag [#allocation6], %s255
        %s257 = sand.u32 %s64, 1
        %s258 = smul.addr %s257, 8
        %s259 = scalar_lea.vmem [#allocation5], %s258
        %p260 = pneg %p77
        %p261 = pneg %p74
        %p262 = pneg %p98
        %p263 = pneg %p95
        %p264 = pneg %p119
        %p265 = pneg %p116
        %p266 = pneg %p145
        %p267 = pneg %p142
        %s268 = sand.u32 %s132, 1
        %s269 = scalar_lea.sflag [#allocation4], %s268
        %s270 = sand.u32 %s132, 1
        %s271 = smul.addr %s270, 8
        %s272 = scalar_lea.vmem [#allocation8], %s271
        %s273 = ssub.s32 %s24, 1
        %p274 = scmp.gt.s32.totalorder %s273, 0
        %s275 = scalar_select %p274, %s273, 0
        %v276 = vld [vmem:[%s230] sm:$0xff]
        %v277 = vld [vmem:[#allocation7] sm:$0xff]
        %v278 = vld [vmem:[#allocation7 + $0x8] sm:$0xff]
        %v279 = vld [vmem:[#allocation7 + $0x10] sm:$0xff]
        %v280 = vld [vmem:[#allocation7 + $0x18] sm:$0xff]
        %v281 = vld [vmem:[#allocation7 + $0x20] sm:$0xff]
        %v282 = vld [vmem:[#allocation7 + $0x28] sm:$0xff]
        %v283 = vld [vmem:[#allocation7 + $0x30] sm:$0xff]
        %v284 = vld [vmem:[#allocation7 + $0x38] sm:$0xff]
        %v285 = vld [vmem:[#allocation7 + $0x40] sm:$0xff]
        %v286 = vld [vmem:[#allocation7 + $0x48] sm:$0xff]
        %v287 = vld [vmem:[#allocation7 + $0x50] sm:$0xff]
        %v288 = vld [vmem:[#allocation7 + $0x58] sm:$0xff]
        %v289 = vld [vmem:[#allocation7 + $0x60] sm:$0xff]
        %v290 = vld [vmem:[#allocation7 + $0x68] sm:$0xff]
        %v291 = vld [vmem:[#allocation7 + $0x70] sm:$0xff]
        %v292 = vld [vmem:[#allocation7 + $0x78] sm:$0xff]
        %v293 = vld [vmem:[%s3] sm:$0x1]
        %v295 = vlaneseq
        %v296 = vshrl.u32 %v295, 7
        %v297 = vsub.s32 0, %v296
        %v298 = vrot.slane %v293, %v297
        %300 = vmatprep.subr.mxu0 0.0
        %301 = vmatpush1.msra.mxu0 %v277
        %302 = vmatprep.subr.mxu0 0.0
        %303 = vmatpush1.msra.mxu0 %v278
        %304 = vmatprep.subr.mxu0 0.0
        %305 = vmatpush1.msra.mxu0 %v279
        %306 = vmatprep.subr.mxu0 0.0
        %307 = vmatpush1.msra.mxu0 %v280
        %308 = vmatprep.subr.mxu0 0.0
        %309 = vmatpush1.msra.mxu0 %v281
        %310 = vmatprep.subr.mxu0 0.0
        %311 = vmatpush1.msra.mxu0 %v282
        %312 = vmatprep.subr.mxu0 0.0
        %313 = vmatpush1.msra.mxu0 %v283
        %314 = vmatprep.subr.mxu0 0.0
        %315 = vmatpush1.msra.mxu0 %v284
        %316 = vmatprep.subr.mxu0 0.0
        %317 = vmatpush1.msra.mxu0 %v285
        %318 = vmatprep.subr.mxu0 0.0
        %319 = vmatpush1.msra.mxu0 %v286
        %320 = vmatprep.subr.mxu0 0.0
        %321 = vmatpush1.msra.mxu0 %v287
        %322 = vmatprep.subr.mxu0 0.0
        %323 = vmatpush1.msra.mxu0 %v288
        %324 = vmatprep.subr.mxu0 0.0
        %325 = vmatpush1.msra.mxu0 %v289
        %326 = vmatprep.subr.mxu0 0.0
        %327 = vmatpush1.msra.mxu0 %v290
        %328 = vmatprep.subr.mxu0 0.0
        %329 = vmatpush1.msra.mxu0 %v291
        %330 = vmatprep.subr.mxu0 0.0
        %331 = vmatpush1.msra.mxu0 %v292
        %332 = vmatprep.subr.mxu0 0.0
        %333 = vmatpush1.msra.mxu0 0.0
        %334 = vmatprep.subr.mxu0 0.0
        %335 = vmatpush1.msra.mxu0 0.0
        %336 = vmatprep.subr.mxu0 0.0
        %337 = vmatpush1.msra.mxu0 0.0
        %338 = vmatprep.subr.mxu0 0.0
        %339 = vmatpush1.msra.mxu0 0.0
        %340 = vmatprep.subr.mxu0 0.0
        %341 = vmatpush1.msra.mxu0 0.0
        %342 = vmatprep.subr.mxu0 0.0
        %343 = vmatpush1.msra.mxu0 0.0
        %344 = vmatprep.subr.mxu0 0.0
        %345 = vmatpush1.msra.mxu0 0.0
        %346 = vmatprep.subr.mxu0 0.0
        %347 = vmatpush1.msra.mxu0 0.0
        %348 = vmatprep.subr.mxu0 0.0
        %349 = vmatpush1.msra.mxu0 0.0
        %350 = vmatprep.subr.mxu0 0.0
        %351 = vmatpush1.msra.mxu0 0.0
        %352 = vmatprep.subr.mxu0 0.0
        %353 = vmatpush1.msra.mxu0 0.0
        %354 = vmatprep.subr.mxu0 0.0
        %355 = vmatpush1.msra.mxu0 0.0
        %356 = vmatprep.subr.mxu0 0.0
        %357 = vmatpush1.msra.mxu0 0.0
        %358 = vmatprep.subr.mxu0 0.0
        %359 = vmatpush1.msra.mxu0 0.0
        %360 = vmatprep.subr.mxu0 0.0
        %361 = vmatpush1.msra.mxu0 0.0
        %362 = vmatprep.subr.mxu0 0.0
        %363 = vmatpush1.msra.mxu0 0.0
        %364 = vmatprep.mubr.f32.mxu0 0.0
        %365 = vmatmul.mubr.f32.gmra.mrb[0].mxu0 %v276
        %v366 = vpop.f32.mrb[0].mxu0
        %v367 = vadd.f32 %v298, %v366
        %v368 = vpop.f32.mrb[0].mxu0
        %369 = vdwg.mxu0
        %v370 = vrot.slane %v276, 1
        %v371 = vsub.f32 %v367, %v370
        %v372 = vmul.f32 %v371, %v371
        %v373 = vlaneseq
        %v374 = vshrl.u32 %v373, 7
        %vm375 = vcmp.lt.s32.totalorder %v374, 7
        %v376 = vsel %vm375, 1, 0
        %vm377 = vcmp.eq.s32.totalorder %v376, 1
        %v378 = vsel %vm377, %v372, 0.0
        %v379 = vld [vmem:[%s239] sm:$0xff]
        %380 = vmatprep.subr.mxu0 0.0
        %381 = vmatpush1.msra.mxu0 %v277
        %382 = vmatprep.subr.mxu0 0.0
        %383 = vmatpush1.msra.mxu0 %v278
        %384 = vmatprep.subr.mxu0 0.0
        %385 = vmatpush1.msra.mxu0 %v279
        %386 = vmatprep.subr.mxu0 0.0
        %387 = vmatpush1.msra.mxu0 %v280
        %388 = vmatprep.subr.mxu0 0.0
        %389 = vmatpush1.msra.mxu0 %v281
        %390 = vmatprep.subr.mxu0 0.0
        %391 = vmatpush1.msra.mxu0 %v282
        %392 = vmatprep.subr.mxu0 0.0
        %393 = vmatpush1.msra.mxu0 %v283
        %394 = vmatprep.subr.mxu0 0.0
        %395 = vmatpush1.msra.mxu0 %v284
        %396 = vmatprep.subr.mxu0 0.0
        %397 = vmatpush1.msra.mxu0 %v285
        %398 = vmatprep.subr.mxu0 0.0
        %399 = vmatpush1.msra.mxu0 %v286
        %400 = vmatprep.subr.mxu0 0.0
        %401 = vmatpush1.msra.mxu0 %v287
        %402 = vmatprep.subr.mxu0 0.0
        %403 = vmatpush1.msra.mxu0 %v288
        %404 = vmatprep.subr.mxu0 0.0
        %405 = vmatpush1.msra.mxu0 %v289
        %406 = vmatprep.subr.mxu0 0.0
        %407 = vmatpush1.msra.mxu0 %v290
        %408 = vmatprep.subr.mxu0 0.0
        %409 = vmatpush1.msra.mxu0 %v291
        %410 = vmatprep.subr.mxu0 0.0
        %411 = vmatpush1.msra.mxu0 %v292
        %412 = vmatprep.subr.mxu0 0.0
        %413 = vmatpush1.msra.mxu0 0.0
        %414 = vmatprep.subr.mxu0 0.0
        %415 = vmatpush1.msra.mxu0 0.0
        %416 = vmatprep.subr.mxu0 0.0
        %417 = vmatpush1.msra.mxu0 0.0
        %418 = vmatprep.subr.mxu0 0.0
        %419 = vmatpush1.msra.mxu0 0.0
        %420 = vmatprep.subr.mxu0 0.0
        %421 = vmatpush1.msra.mxu0 0.0
        %422 = vmatprep.subr.mxu0 0.0
        %423 = vmatpush1.msra.mxu0 0.0
        %424 = vmatprep.subr.mxu0 0.0
        %425 = vmatpush1.msra.mxu0 0.0
        %426 = vmatprep.subr.mxu0 0.0
        %427 = vmatpush1.msra.mxu0 0.0
        %428 = vmatprep.subr.mxu0 0.0
        %429 = vmatpush1.msra.mxu0 0.0
        %430 = vmatprep.subr.mxu0 0.0
        %431 = vmatpush1.msra.mxu0 0.0
        %432 = vmatprep.subr.mxu0 0.0
        %433 = vmatpush1.msra.mxu0 0.0
        %434 = vmatprep.subr.mxu0 0.0
        %435 = vmatpush1.msra.mxu0 0.0
        %436 = vmatprep.subr.mxu0 0.0
        %437 = vmatpush1.msra.mxu0 0.0
        %438 = vmatprep.subr.mxu0 0.0
        %439 = vmatpush1.msra.mxu0 0.0
        %440 = vmatprep.subr.mxu0 0.0
        %441 = vmatpush1.msra.mxu0 0.0
        %442 = vmatprep.subr.mxu0 0.0
        %443 = vmatpush1.msra.mxu0 0.0
        %444 = vmatprep.mubr.f32.mxu0 0.0
        %445 = vmatmul.mubr.f32.gmra.mrb[0].mxu0 %v379
        %v446 = vpop.f32.mrb[0].mxu0
        %v447 = vadd.f32 %v298, %v446
        %v448 = vpop.f32.mrb[0].mxu0
        %449 = vdwg.mxu0
        %v451 = vrot.slane %v276, 1
        %v453 = vsub.f32 %v447, %v451
        %v454 = vadd.f32 %v378, 0.0
        %vm455 = vcmp.eq.s32.totalorder %v374, 0
        %p456 = scmp.gt.s32.totalorder %s24, 0
        %s457 = scalar_select %p456, 1, 0
        %v458 = vstv %s457
        %vm459 = vcmp.eq.s32.totalorder %v458, 1
        %vm460 = vmand %vm455, %vm459
        %v461 = vmul.f32 %v453, %v453
        %v462 = vsel %vm460, 1, 0
        %vm463 = vcmp.eq.s32.totalorder %v462, 1
        %v464 = vlaneseq
        %v465 = vshrl.u32 %v464, 7
        %v466 = vsub.s32 7, %v465
        %v467 = vrot.slane %v461, %v466
        %v468 = vsel %vm463, %v467, 0.0
        %v469 = vadd.f32 %v454, %v468
        %470 = vst [vmem:[%s272] sm:$0xff] %v469
        %s471 = sand.u32 %s132, 1
        %s472 = scalar_lea.sflag [#allocation4], %s471
        %s473 = sand.u32 %s132, 1
        %s474 = smul.addr %s473, 8
        %s475 = scalar_lea.vmem [#allocation8], %s474
        // Predicated region
        $region49: #{tpu_custom_call.1} parent=35 // pred_check
          %p476 = pneg %p142
        $region50: #{tpu_custom_call.1} parent=35 // pred_check_branch
          %478 = sbr.rel (%p476) target = $region52
        $region51: #{tpu_custom_call.1} parent=35 // pred_region
          %s480 = ssub.s32 128, 128
          %481 = vsyncadd %s472, %s480
          %s482 = smul.addr %s24, 128
          %s483 = scalar_lea.hbm %s4, %s482
          %s485 = sshll.u32 %s475, 4
          %s486 = int_to_ptr.vmem [resolvable:$true] %s485
          %488 = dma.vmem_to_hbm [thread:$0]  %s486, 128, %s483, %s472
        $region52: #{tpu_custom_call.1} parent=35 // pred_fallthru
          _
      $region36: #{tpu_custom_call.1} parent=5 // pred_fallthru
        _
      %p489 = scmp.le.s32.totalorder 2, %s19
      // Predicated region
      $region53: #{tpu_custom_call.1} parent=5 // pred_check
        %p490 = pneg %p489
      $region54: #{tpu_custom_call.1} parent=5 // pred_check_branch
        %492 = sbr.rel (%p490) target = $region56
      $region55: #{tpu_custom_call.1} parent=5 // pred_region
        %s493 = ssub.s32 %s19, 2
        // Predicated region
        $region57: #{tpu_custom_call.1} parent=55 // pred_check
          %p494 = pneg %p148
        $region58: #{tpu_custom_call.1} parent=55 // pred_check_branch
          %496 = sbr.rel (%p494) target = $region60
        $region59: #{tpu_custom_call.1} parent=55 // pred_region
          %s497 = sand.u32 %s133, 1
          %s498 = scalar_lea.sflag [#allocation4], %s497
          %s499 = sand.u32 %s133, 1
          %s500 = smul.addr %s499, 8
          %s501 = scalar_lea.vmem [#allocation8], %s500
          %502 = dma.done %s498, 128
        $region60: #{tpu_custom_call.1} parent=55 // pred_fallthru
          _
      $region56: #{tpu_custom_call.1} parent=5 // pred_fallthru
        _
    $region6: #{tpu_custom_call.1} parent=1 // loop_footer
      %s23 = sadd.s32 1, %s19
    $region7: #{tpu_custom_call.1} parent=1 // loop_footer_branch
      %18 = sbr.rel target = $region3
    $region8: #{tpu_custom_call.1} parent=1 // loop_exit
      _
    %503 = vsyncpa [#allocation3], 1
    %s504 = scalar_lea.sflag [#allocation3], 1
    %505 = vsyncpa %s504, 1
    %506 = vsyncpa [#allocation6], 1
    %s507 = scalar_lea.sflag [#allocation6], 1
    %508 = vsyncpa %s507, 1
    %509 = vsyncpa [#allocation4], 1
    %s510 = scalar_lea.sflag [#allocation4], 1
    %511 = vsyncpa %s510, 1

</llo_original>
